<compile_context>
chip_gen: v6e
topology: v6e:2x2x1
jax: 0.10.0
libtpu: 0.0.40
codegen_flags: <defaults>
</compile_context>

<pallas_src>
import functools

import jax
import jax.numpy as jnp
from jax.experimental import pallas as pl
from jax.experimental.pallas import tpu as pltpu

EPS = 1e-5

_COMPILER_PARAMS = pltpu.CompilerParams(
    dimension_semantics=("parallel",),          # batch axis: independent blocks
    vmem_limit_bytes=32 * 1024 * 1024,          # fits v5e/v6e/v7x scoped VMEM
)


# ----------------------------------------------------------------------------
# In-kernel helper: depthwise 3x3 "same" conv on a (C, H*W) channels-major slab
# ----------------------------------------------------------------------------
def _dw3x3(x, dw_ref, mask_ref, width):
    """x: (C, P) f32 already activated, P = H*W (W == `width`).
    dw_ref:   (9, C, 1)  per-tap per-channel weights, k = kh*3 + kw.
    mask_ref: (9, 1, P)  0/1 edge masks (emulate zero padding).
    Shifts are lane rolls (XLU) + mask multiplies (VPU): no pads, no slices."""
    C, P = x.shape
    acc = jnp.zeros((C, P), jnp.float32)
    k = 0
    for dh in (-1, 0, 1):
        for dw in (-1, 0, 1):
            shift = (-(dh * width + dw)) % P
            t = pltpu.roll(x, shift=shift, axis=1) if shift else x
            acc = acc + (t * mask_ref[k]) * dw_ref[k]
            k += 1
    return acc


# ----------------------------------------------------------------------------
# Stage A: ReLU -> DW3x3(stride) -> PW1x1(Cin->Cin), emit partial BN1 stats
# ----------------------------------------------------------------------------
def _stage1_kernel(x_ref, dw_ref, pw_ref, mask_ref, *rest, width, with_stride):
    if with_stride:
        sel_ref, y_ref, st_ref = rest
    else:
        y_ref, st_ref = rest

    x = jnp.maximum(x_ref[0].astype(jnp.float32), 0.0)                # ReLU
    h = _dw3x3(x, dw_ref, mask_ref, width)                            # DW 3x3
    y = jnp.dot(pw_ref[...], h, preferred_element_type=jnp.float32)   # PW 1x1
    if with_stride:
        # fold the stride: subsample in VMEM before anything reaches HBM
        y = jnp.dot(y, sel_ref[...], preferred_element_type=jnp.float32)

    # per-sample partial BN statistics (finalized in stage B -> 2-pass BN)
    st_ref[0, :, 0:1] = jnp.sum(y, axis=1, keepdims=True)
    st_ref[0, :, 1:2] = jnp.sum(y * y, axis=1, keepdims=True)
    y_ref[0] = y.astype(y_ref.dtype)


# ----------------------------------------------------------------------------
# Stage B: BN1 -> ReLU -> DW3x3(1) -> PW1x1(Cin->Cout), emit partial BN2 stats
# ----------------------------------------------------------------------------
def _stage2_kernel(y1_ref, st1_ref, g1_ref, b1_ref, dw_ref, pw_ref, mask_ref,
                   y2_ref, st2_ref, *, width, count):
    sums = jnp.sum(st1_ref[...].astype(jnp.float32), axis=0)          # (C, 2)
    mean = sums[:, 0:1] / count
    var = sums[:, 1:2] / count - mean * mean                          # biased
    z = (y1_ref[0].astype(jnp.float32) - mean) * jax.lax.rsqrt(var + EPS)
    z = z * g1_ref[...] + b1_ref[...]                                 # BN affine
    z = jnp.maximum(z, 0.0)                                           # ReLU
    h = _dw3x3(z, dw_ref, mask_ref, width)                            # DW 3x3
    y = jnp.dot(pw_ref[...], h, preferred_element_type=jnp.float32)   # PW 1x1

    st2_ref[0, :, 0:1] = jnp.sum(y, axis=1, keepdims=True)
    st2_ref[0, :, 1:2] = jnp.sum(y * y, axis=1, keepdims=True)
    y2_ref[0] = y.astype(y2_ref.dtype)


# ----------------------------------------------------------------------------
# Stage C: BN2 normalize (second pass of the 2-pass batch norm)
# ----------------------------------------------------------------------------
def _bn_kernel(y_ref, st_ref, g_ref, b_ref, o_ref, *, count):
    sums = jnp.sum(st_ref[...].astype(jnp.float32), axis=0)
    mean = sums[:, 0:1] / count
    var = sums[:, 1:2] / count - mean * mean
    z = (y_ref[0].astype(jnp.float32) - mean) * jax.lax.rsqrt(var + EPS)
    o_ref[0] = (z * g_ref[...] + b_ref[...]).astype(o_ref.dtype)


# ----------------------------------------------------------------------------
# Wrapper-side constant builders (tiny, data-independent)
# ----------------------------------------------------------------------------
def _edge_masks(H, W):
    hh, ww = jnp.meshgrid(jnp.arange(H), jnp.arange(W), indexing="ij")
    rows = []
    for dh in (-1, 0, 1):
        for dw in (-1, 0, 1):
            ok = ((hh + dh >= 0) & (hh + dh < H) &
                  (ww + dw >= 0) & (ww + dw < W))
            rows.append(ok.reshape(1, H * W))
    return jnp.stack(rows, axis=0).astype(jnp.float32)        # (9, 1, H*W)


def _stride_select(H, W, H1, W1, stride):
    sh = (jnp.arange(H)[:, None] == stride * jnp.arange(H1)[None, :])
    sw = (jnp.arange(W)[:, None] == stride * jnp.arange(W1)[None, :])
    sel = jnp.einsum("ab,cd->acbd",
                     sh.astype(jnp.float32), sw.astype(jnp.float32))
    return sel.reshape(H * W, H1 * W1)                         # (P, P1)


# ----------------------------------------------------------------------------
# Forward pass
# ----------------------------------------------------------------------------
def sep_conv_pallas(x_nchw, params, stride):
    N, C_in, H, W = x_nchw.shape
    C_out = params["pw2"].shape[0]
    H1 = (H - 1) // stride + 1                                 # pad=1, k=3
    W1 = (W - 1) // stride + 1
    P, P1 = H * W, H1 * W1
    count = float(N * P1)                                      # BN over (N,H1,W1)

    # channels-major, spatially-flattened layout (free view of NCHW)
    x = x_nchw.reshape(N, C_in, P)

    # weight re-layouts (tiny one-time XLA ops)
    dw1 = jnp.transpose(params["dw1"][:, 0], (1, 2, 0)).reshape(9, C_in, 1)
    dw2 = jnp.transpose(params["dw2"][:, 0], (1, 2, 0)).reshape(9, C_in, 1)
    pw1 = params["pw1"][:, :, 0, 0]                            # (Cin, Cin)
    pw2 = params["pw2"][:, :, 0, 0]                            # (Cout, Cin)
    g1 = params["g1"].reshape(C_in, 1)
    b1 = params["b1"].reshape(C_in, 1)
    g2 = params["g2"].reshape(C_out, 1)
    b2 = params["b2"].reshape(C_out, 1)

    masks1 = _edge_masks(H, W)                                 # (9, 1, P)
    masks2 = _edge_masks(H1, W1)                               # (9, 1, P1)

    def full(*shape):
        return pl.BlockSpec(shape, lambda n, _r=len(shape): (0,) * _r)

    def per_n(*shape):
        return pl.BlockSpec((1,) + shape,
                            lambda n, _r=len(shape): (n,) + (0,) * _r)

    # ---- stage A: ReLU -> DW3x3(stride) -> PW1x1 (+ BN1 partial stats) ------
    with_stride = stride != 1
    in_specs = [per_n(C_in, P), full(9, C_in, 1), full(C_in, C_in),
                full(9, 1, P)]
    inputs = [x, dw1, pw1, masks1]
    if with_stride:
        in_specs.append(full(P, P1))
        inputs.append(_stride_select(H, W, H1, W1, stride))

    y1, st1 = pl.pallas_call(
        functools.partial(_stage1_kernel, width=W, with_stride=with_stride),
        grid=(N,),
        in_specs=in_specs,
        out_specs=(per_n(C_in, P1), per_n(C_in, 2)),
        out_shape=(jax.ShapeDtypeStruct((N, C_in, P1), jnp.float32),
                   jax.ShapeDtypeStruct((N, C_in, 2), jnp.float32)),
        compiler_params=_COMPILER_PARAMS,
        cost_estimate=pl.CostEstimate(
            flops=int(N * (18 * C_in * P + 2 * C_in * C_in * P
                           + 2 * C_in * P * P1)),
            transcendentals=0,
            bytes_accessed=int(4 * N * (C_in * P + 2 * C_in * P1))),
    )(*inputs)

    # ---- stage B: BN1 -> ReLU -> DW3x3(1) -> PW1x1 (+ BN2 partial stats) ----
    y2, st2 = pl.pallas_call(
        functools.partial(_stage2_kernel, width=W1, count=count),
        grid=(N,),
        in_specs=[per_n(C_in, P1), full(N, C_in, 2), full(C_in, 1),
                  full(C_in, 1), full(9, C_in, 1), full(C_out, C_in),
                  full(9, 1, P1)],
        out_specs=(per_n(C_out, P1), per_n(C_out, 2)),
        out_shape=(jax.ShapeDtypeStruct((N, C_out, P1), jnp.float32),
                   jax.ShapeDtypeStruct((N, C_out, 2), jnp.float32)),
        compiler_params=_COMPILER_PARAMS,
        cost_estimate=pl.CostEstimate(
            flops=int(N * (24 * C_in * P1 + 2 * C_out * C_in * P1)),
            transcendentals=0,
            bytes_accessed=int(4 * N * (C_in * P1 + 2 * C_out * P1))),
    )(y1, st1, g1, b1, dw2, pw2, masks2)

    # ---- stage C: BN2 normalize (needs global stats -> separate pass) -------
    out = pl.pallas_call(
        functools.partial(_bn_kernel, count=count),
        grid=(N,),
        in_specs=[per_n(C_out, P1), full(N, C_out, 2), full(C_out, 1),
                  full(C_out, 1)],
        out_specs=per_n(C_out, P1),
        out_shape=jax.ShapeDtypeStruct((N, C_out, P1), jnp.float32),
        compiler_params=_COMPILER_PARAMS,
        cost_estimate=pl.CostEstimate(
            flops=int(4 * N * C_out * P1),
            transcendentals=0,
            bytes_accessed=int(8 * N * C_out * P1)),
    )(y2, st2, g2, b2)

    return out.reshape(N, C_out, H1, W1)


# ----------------------------------------------------------------------------
# Pure-JAX reference (for the correctness check)
# ----------------------------------------------------------------------------
def sep_conv_ref(x, params, stride):
    def dwconv(x, w, s):
        return jax.lax.conv_general_dilated(
            x, w, (s, s), ((1, 1), (1, 1)),
            dimension_numbers=("NCHW", "OIHW", "NCHW"),
            feature_group_count=x.shape[1])

    def pwconv(x, w):
        return jax.lax.conv_general_dilated(
            x, w, (1, 1), "VALID",
            dimension_numbers=("NCHW", "OIHW", "NCHW"))

    def bn(x, g, b):
        mean = x.mean(axis=(0, 2, 3), keepdims=True)
        var = ((x - mean) ** 2).mean(axis=(0, 2, 3), keepdims=True)
        xhat = (x - mean) * jax.lax.rsqrt(var + EPS)
        return xhat * g.reshape(1, -1, 1, 1) + b.reshape(1, -1, 1, 1)

    y = jnp.maximum(x, 0.0)
    y = dwconv(y, params["dw1"], stride)
    y = pwconv(y, params["pw1"])
    y = bn(y, params["g1"], params["b1"])
    y = jnp.maximum(y, 0.0)
    y = dwconv(y, params["dw2"], 1)
    y = pwconv(y, params["pw2"])
    y = bn(y, params["g2"], params["b2"])
    return y


if __name__ == "__main__":
    N, C_in, C_out, HW, stride = 2, 4, 8, 16, 2

    key = jax.random.PRNGKey(0)
    kx, k0, k1, k2, k3 = jax.random.split(key, 5)

    x = jax.random.normal(kx, (N, C_in, HW, HW), jnp.float32)

    # PyTorch layouts: depthwise (C,1,K,K), pointwise (Cout,Cin,1,1)
    params = {
        "dw1": 0.2 * jax.random.normal(k0, (C_in, 1, 3, 3), jnp.float32),
        "pw1": 0.2 * jax.random.normal(k1, (C_in, C_in, 1, 1), jnp.float32),
        "dw2": 0.2 * jax.random.normal(k2, (C_in, 1, 3, 3), jnp.float32),
        "pw2": 0.2 * jax.random.normal(k3, (C_out, C_in, 1, 1), jnp.float32),
        "g1": jnp.ones((C_in,), jnp.float32),
        "b1": jnp.zeros((C_in,), jnp.float32),
        "g2": jnp.ones((C_out,), jnp.float32),
        "b2": jnp.zeros((C_out,), jnp.float32),
    }

    out = jax.block_until_ready(sep_conv_pallas(x, params, stride))
    ref = jax.block_until_ready(sep_conv_ref(x, params, stride))

    assert out.shape == ref.shape, (out.shape, ref.shape)
    max_err = float(jnp.max(jnp.abs(out - ref)))
    assert jnp.allclose(out, ref, rtol=1e-4, atol=1e-4), max_err

    print("KERNEL_OK")
</pallas_src>

<mosaic_0001>
module attributes {stable_mosaic.version = 11 : i64} {
  func.func @_stage1_kernel(%arg0: i32, %arg1: memref<1x4x256xf32, #tpu.memory_space<vmem>>, %arg2: memref<9x4x1xf32, #tpu.memory_space<vmem>>, %arg3: memref<4x4xf32, #tpu.memory_space<vmem>>, %arg4: memref<9x1x256xf32, #tpu.memory_space<vmem>>, %arg5: memref<256x64xf32, #tpu.memory_space<vmem>>, %arg6: memref<1x4x64xf32, #tpu.memory_space<vmem>>, %arg7: memref<1x4x2xf32, #tpu.memory_space<vmem>>) attributes {dimension_semantics = [#tpu.dimension_semantics<parallel>], iteration_bounds = array<i64: 2>, scalar_prefetch = 0 : i64, scratch_operands = 0 : i64, tpu.core_type = #tpu.core_type<tc>, window_params = [{transform_indices = @transform_0, window_bounds = array<i64: 1, 4, 256>}, {pipeline_mode = #tpu.pipeline_mode<synchronous>, transform_indices = @transform_1, window_bounds = array<i64: 9, 4, 1>}, {pipeline_mode = #tpu.pipeline_mode<synchronous>, transform_indices = @transform_2, window_bounds = array<i64: 4, 4>}, {pipeline_mode = #tpu.pipeline_mode<synchronous>, transform_indices = @transform_3, window_bounds = array<i64: 9, 1, 256>}, {pipeline_mode = #tpu.pipeline_mode<synchronous>, transform_indices = @transform_4, window_bounds = array<i64: 256, 64>}, {transform_indices = @transform_5, window_bounds = array<i64: 1, 4, 64>}, {transform_indices = @transform_6, window_bounds = array<i64: 1, 4, 2>}]} {
    %c0 = arith.constant 0 : index
    %c0_0 = arith.constant 0 : index
    %c0_1 = arith.constant 0 : index
    %0 = vector.load %arg1[%c0, %c0_0, %c0_1] : memref<1x4x256xf32, #tpu.memory_space<vmem>>, vector<1x4x256xf32>
    %1 = vector.shape_cast %0 : vector<1x4x256xf32> to vector<4x256xf32>
    %cst = arith.constant 0.000000e+00 : f32
    %2 = vector.broadcast %cst : f32 to vector<4x256xf32>
    %3 = arith.maximumf %1, %2 : vector<4x256xf32>
    %cst_2 = arith.constant 0.000000e+00 : f32
    %4 = vector.broadcast %cst_2 : f32 to vector<4x256xf32>
    %c17_i32 = arith.constant 17 : i32
    %5 = tpu.dynamic_rotate %3 by %c17_i32 dim 1 : vector<4x256xf32>, i32 -> vector<4x256xf32>
    %c0_3 = arith.constant 0 : index
    %c0_4 = arith.constant 0 : index
    %c0_5 = arith.constant 0 : index
    %6 = vector.load %arg4[%c0_3, %c0_4, %c0_5] : memref<9x1x256xf32, #tpu.memory_space<vmem>>, vector<1x1x256xf32>
    %7 = vector.shape_cast %6 : vector<1x1x256xf32> to vector<1x256xf32>
    %8 = vector.broadcast %7 : vector<1x256xf32> to vector<4x256xf32>
    %9 = arith.mulf %5, %8 : vector<4x256xf32>
    %c0_6 = arith.constant 0 : index
    %c0_7 = arith.constant 0 : index
    %c0_8 = arith.constant 0 : index
    %10 = vector.load %arg2[%c0_6, %c0_7, %c0_8] : memref<9x4x1xf32, #tpu.memory_space<vmem>>, vector<1x4x1xf32>
    %11 = vector.shape_cast %10 : vector<1x4x1xf32> to vector<4x1xf32>
    %12 = vector.broadcast %11 : vector<4x1xf32> to vector<4x256xf32>
    %13 = arith.mulf %9, %12 : vector<4x256xf32>
    %14 = arith.addf %4, %13 : vector<4x256xf32>
    %c16_i32 = arith.constant 16 : i32
    %15 = tpu.dynamic_rotate %3 by %c16_i32 dim 1 : vector<4x256xf32>, i32 -> vector<4x256xf32>
    %c1 = arith.constant 1 : index
    %c0_9 = arith.constant 0 : index
    %c0_10 = arith.constant 0 : index
    %16 = vector.load %arg4[%c1, %c0_9, %c0_10] : memref<9x1x256xf32, #tpu.memory_space<vmem>>, vector<1x1x256xf32>
    %17 = vector.shape_cast %16 : vector<1x1x256xf32> to vector<1x256xf32>
    %18 = vector.broadcast %17 : vector<1x256xf32> to vector<4x256xf32>
    %19 = arith.mulf %15, %18 : vector<4x256xf32>
    %c1_11 = arith.constant 1 : index
    %c0_12 = arith.constant 0 : index
    %c0_13 = arith.constant 0 : index
    %20 = vector.load %arg2[%c1_11, %c0_12, %c0_13] : memref<9x4x1xf32, #tpu.memory_space<vmem>>, vector<1x4x1xf32>
    %21 = vector.shape_cast %20 : vector<1x4x1xf32> to vector<4x1xf32>
    %22 = vector.broadcast %21 : vector<4x1xf32> to vector<4x256xf32>
    %23 = arith.mulf %19, %22 : vector<4x256xf32>
    %24 = arith.addf %14, %23 : vector<4x256xf32>
    %c15_i32 = arith.constant 15 : i32
    %25 = tpu.dynamic_rotate %3 by %c15_i32 dim 1 : vector<4x256xf32>, i32 -> vector<4x256xf32>
    %c2 = arith.constant 2 : index
    %c0_14 = arith.constant 0 : index
    %c0_15 = arith.constant 0 : index
    %26 = vector.load %arg4[%c2, %c0_14, %c0_15] : memref<9x1x256xf32, #tpu.memory_space<vmem>>, vector<1x1x256xf32>
    %27 = vector.shape_cast %26 : vector<1x1x256xf32> to vector<1x256xf32>
    %28 = vector.broadcast %27 : vector<1x256xf32> to vector<4x256xf32>
    %29 = arith.mulf %25, %28 : vector<4x256xf32>
    %c2_16 = arith.constant 2 : index
    %c0_17 = arith.constant 0 : index
    %c0_18 = arith.constant 0 : index
    %30 = vector.load %arg2[%c2_16, %c0_17, %c0_18] : memref<9x4x1xf32, #tpu.memory_space<vmem>>, vector<1x4x1xf32>
    %31 = vector.shape_cast %30 : vector<1x4x1xf32> to vector<4x1xf32>
    %32 = vector.broadcast %31 : vector<4x1xf32> to vector<4x256xf32>
    %33 = arith.mulf %29, %32 : vector<4x256xf32>
    %34 = arith.addf %24, %33 : vector<4x256xf32>
    %c1_i32 = arith.constant 1 : i32
    %35 = tpu.dynamic_rotate %3 by %c1_i32 dim 1 : vector<4x256xf32>, i32 -> vector<4x256xf32>
    %c3 = arith.constant 3 : index
    %c0_19 = arith.constant 0 : index
    %c0_20 = arith.constant 0 : index
    %36 = vector.load %arg4[%c3, %c0_19, %c0_20] : memref<9x1x256xf32, #tpu.memory_space<vmem>>, vector<1x1x256xf32>
    %37 = vector.shape_cast %36 : vector<1x1x256xf32> to vector<1x256xf32>
    %38 = vector.broadcast %37 : vector<1x256xf32> to vector<4x256xf32>
    %39 = arith.mulf %35, %38 : vector<4x256xf32>
    %c3_21 = arith.constant 3 : index
    %c0_22 = arith.constant 0 : index
    %c0_23 = arith.constant 0 : index
    %40 = vector.load %arg2[%c3_21, %c0_22, %c0_23] : memref<9x4x1xf32, #tpu.memory_space<vmem>>, vector<1x4x1xf32>
    %41 = vector.shape_cast %40 : vector<1x4x1xf32> to vector<4x1xf32>
    %42 = vector.broadcast %41 : vector<4x1xf32> to vector<4x256xf32>
    %43 = arith.mulf %39, %42 : vector<4x256xf32>
    %44 = arith.addf %34, %43 : vector<4x256xf32>
    %c4 = arith.constant 4 : index
    %c0_24 = arith.constant 0 : index
    %c0_25 = arith.constant 0 : index
    %45 = vector.load %arg4[%c4, %c0_24, %c0_25] : memref<9x1x256xf32, #tpu.memory_space<vmem>>, vector<1x1x256xf32>
    %46 = vector.shape_cast %45 : vector<1x1x256xf32> to vector<1x256xf32>
    %47 = vector.broadcast %46 : vector<1x256xf32> to vector<4x256xf32>
    %48 = arith.mulf %3, %47 : vector<4x256xf32>
    %c4_26 = arith.constant 4 : index
    %c0_27 = arith.constant 0 : index
    %c0_28 = arith.constant 0 : index
    %49 = vector.load %arg2[%c4_26, %c0_27, %c0_28] : memref<9x4x1xf32, #tpu.memory_space<vmem>>, vector<1x4x1xf32>
    %50 = vector.shape_cast %49 : vector<1x4x1xf32> to vector<4x1xf32>
    %51 = vector.broadcast %50 : vector<4x1xf32> to vector<4x256xf32>
    %52 = arith.mulf %48, %51 : vector<4x256xf32>
    %53 = arith.addf %44, %52 : vector<4x256xf32>
    %c255_i32 = arith.constant 255 : i32
    %54 = tpu.dynamic_rotate %3 by %c255_i32 dim 1 : vector<4x256xf32>, i32 -> vector<4x256xf32>
    %c5 = arith.constant 5 : index
    %c0_29 = arith.constant 0 : index
    %c0_30 = arith.constant 0 : index
    %55 = vector.load %arg4[%c5, %c0_29, %c0_30] : memref<9x1x256xf32, #tpu.memory_space<vmem>>, vector<1x1x256xf32>
    %56 = vector.shape_cast %55 : vector<1x1x256xf32> to vector<1x256xf32>
    %57 = vector.broadcast %56 : vector<1x256xf32> to vector<4x256xf32>
    %58 = arith.mulf %54, %57 : vector<4x256xf32>
    %c5_31 = arith.constant 5 : index
    %c0_32 = arith.constant 0 : index
    %c0_33 = arith.constant 0 : index
    %59 = vector.load %arg2[%c5_31, %c0_32, %c0_33] : memref<9x4x1xf32, #tpu.memory_space<vmem>>, vector<1x4x1xf32>
    %60 = vector.shape_cast %59 : vector<1x4x1xf32> to vector<4x1xf32>
    %61 = vector.broadcast %60 : vector<4x1xf32> to vector<4x256xf32>
    %62 = arith.mulf %58, %61 : vector<4x256xf32>
    %63 = arith.addf %53, %62 : vector<4x256xf32>
    %c241_i32 = arith.constant 241 : i32
    %64 = tpu.dynamic_rotate %3 by %c241_i32 dim 1 : vector<4x256xf32>, i32 -> vector<4x256xf32>
    %c6 = arith.constant 6 : index
    %c0_34 = arith.constant 0 : index
    %c0_35 = arith.constant 0 : index
    %65 = vector.load %arg4[%c6, %c0_34, %c0_35] : memref<9x1x256xf32, #tpu.memory_space<vmem>>, vector<1x1x256xf32>
    %66 = vector.shape_cast %65 : vector<1x1x256xf32> to vector<1x256xf32>
    %67 = vector.broadcast %66 : vector<1x256xf32> to vector<4x256xf32>
    %68 = arith.mulf %64, %67 : vector<4x256xf32>
    %c6_36 = arith.constant 6 : index
    %c0_37 = arith.constant 0 : index
    %c0_38 = arith.constant 0 : index
    %69 = vector.load %arg2[%c6_36, %c0_37, %c0_38] : memref<9x4x1xf32, #tpu.memory_space<vmem>>, vector<1x4x1xf32>
    %70 = vector.shape_cast %69 : vector<1x4x1xf32> to vector<4x1xf32>
    %71 = vector.broadcast %70 : vector<4x1xf32> to vector<4x256xf32>
    %72 = arith.mulf %68, %71 : vector<4x256xf32>
    %73 = arith.addf %63, %72 : vector<4x256xf32>
    %c240_i32 = arith.constant 240 : i32
    %74 = tpu.dynamic_rotate %3 by %c240_i32 dim 1 : vector<4x256xf32>, i32 -> vector<4x256xf32>
    %c7 = arith.constant 7 : index
    %c0_39 = arith.constant 0 : index
    %c0_40 = arith.constant 0 : index
    %75 = vector.load %arg4[%c7, %c0_39, %c0_40] : memref<9x1x256xf32, #tpu.memory_space<vmem>>, vector<1x1x256xf32>
    %76 = vector.shape_cast %75 : vector<1x1x256xf32> to vector<1x256xf32>
    %77 = vector.broadcast %76 : vector<1x256xf32> to vector<4x256xf32>
    %78 = arith.mulf %74, %77 : vector<4x256xf32>
    %c7_41 = arith.constant 7 : index
    %c0_42 = arith.constant 0 : index
    %c0_43 = arith.constant 0 : index
    %79 = vector.load %arg2[%c7_41, %c0_42, %c0_43] : memref<9x4x1xf32, #tpu.memory_space<vmem>>, vector<1x4x1xf32>
    %80 = vector.shape_cast %79 : vector<1x4x1xf32> to vector<4x1xf32>
    %81 = vector.broadcast %80 : vector<4x1xf32> to vector<4x256xf32>
    %82 = arith.mulf %78, %81 : vector<4x256xf32>
    %83 = arith.addf %73, %82 : vector<4x256xf32>
    %c239_i32 = arith.constant 239 : i32
    %84 = tpu.dynamic_rotate %3 by %c239_i32 dim 1 : vector<4x256xf32>, i32 -> vector<4x256xf32>
    %c8 = arith.constant 8 : index
    %c0_44 = arith.constant 0 : index
    %c0_45 = arith.constant 0 : index
    %85 = vector.load %arg4[%c8, %c0_44, %c0_45] : memref<9x1x256xf32, #tpu.memory_space<vmem>>, vector<1x1x256xf32>
    %86 = vector.shape_cast %85 : vector<1x1x256xf32> to vector<1x256xf32>
    %87 = vector.broadcast %86 : vector<1x256xf32> to vector<4x256xf32>
    %88 = arith.mulf %84, %87 : vector<4x256xf32>
    %c8_46 = arith.constant 8 : index
    %c0_47 = arith.constant 0 : index
    %c0_48 = arith.constant 0 : index
    %89 = vector.load %arg2[%c8_46, %c0_47, %c0_48] : memref<9x4x1xf32, #tpu.memory_space<vmem>>, vector<1x4x1xf32>
    %90 = vector.shape_cast %89 : vector<1x4x1xf32> to vector<4x1xf32>
    %91 = vector.broadcast %90 : vector<4x1xf32> to vector<4x256xf32>
    %92 = arith.mulf %88, %91 : vector<4x256xf32>
    %93 = arith.addf %83, %92 : vector<4x256xf32>
    %c0_49 = arith.constant 0 : index
    %c0_50 = arith.constant 0 : index
    %94 = vector.load %arg3[%c0_49, %c0_50] : memref<4x4xf32, #tpu.memory_space<vmem>>, vector<4x4xf32>
    %cst_51 = arith.constant dense<0.000000e+00> : vector<4x256xf32>
    %95 = tpu.matmul %94, %93, %cst_51 {dimension_numbers = #tpu.dot_dimension_numbers<[1], [0], [0], [1], [0, 0, 1, 1], [], []>} : vector<4x4xf32>, vector<4x256xf32>, vector<4x256xf32> -> vector<4x256xf32>
    %c0_52 = arith.constant 0 : index
    %c0_53 = arith.constant 0 : index
    %96 = vector.load %arg5[%c0_52, %c0_53] : memref<256x64xf32, #tpu.memory_space<vmem>>, vector<256x64xf32>
    %cst_54 = arith.constant dense<0.000000e+00> : vector<4x64xf32>
    %97 = tpu.matmul %95, %96, %cst_54 {dimension_numbers = #tpu.dot_dimension_numbers<[1], [0], [0], [1], [0, 0, 1, 1], [], []>} : vector<4x256xf32>, vector<256x64xf32>, vector<4x64xf32> -> vector<4x64xf32>
    %cst_55 = arith.constant dense<0.000000e+00> : vector<4xf32>
    %98 = vector.multi_reduction <add>, %97, %cst_55 [1] : vector<4x64xf32> to vector<4xf32>
    %99 = vector.shape_cast %98 : vector<4xf32> to vector<4x1xf32>
    %c0_56 = arith.constant 0 : index
    %c0_57 = arith.constant 0 : index
    %c0_58 = arith.constant 0 : index
    %100 = vector.load %arg7[%c0_56, %c0_57, %c0_58] : memref<1x4x2xf32, #tpu.memory_space<vmem>>, vector<1x4x1xf32>
    %101 = vector.shape_cast %100 : vector<1x4x1xf32> to vector<4x1xf32>
    %102 = vector.shape_cast %99 : vector<4x1xf32> to vector<1x4x1xf32>
    tpu.vector_store %arg7[%c0_56, %c0_57, %c0_58], %102 {strides = array<i32>} : memref<1x4x2xf32, #tpu.memory_space<vmem>>, vector<1x4x1xf32>,
    %103 = arith.mulf %97, %97 : vector<4x64xf32>
    %cst_59 = arith.constant dense<0.000000e+00> : vector<4xf32>
    %104 = vector.multi_reduction <add>, %103, %cst_59 [1] : vector<4x64xf32> to vector<4xf32>
    %105 = vector.shape_cast %104 : vector<4xf32> to vector<4x1xf32>
    %c0_60 = arith.constant 0 : index
    %c0_61 = arith.constant 0 : index
    %c1_62 = arith.constant 1 : index
    %106 = vector.load %arg7[%c0_60, %c0_61, %c1_62] : memref<1x4x2xf32, #tpu.memory_space<vmem>>, vector<1x4x1xf32>
    %107 = vector.shape_cast %106 : vector<1x4x1xf32> to vector<4x1xf32>
    %108 = vector.shape_cast %105 : vector<4x1xf32> to vector<1x4x1xf32>
    tpu.vector_store %arg7[%c0_60, %c0_61, %c1_62], %108 {strides = array<i32>} : memref<1x4x2xf32, #tpu.memory_space<vmem>>, vector<1x4x1xf32>,
    %c0_63 = arith.constant 0 : index
    %c0_64 = arith.constant 0 : index
    %c0_65 = arith.constant 0 : index
    %109 = vector.load %arg6[%c0_63, %c0_64, %c0_65] : memref<1x4x64xf32, #tpu.memory_space<vmem>>, vector<1x4x64xf32>
    %110 = vector.shape_cast %109 : vector<1x4x64xf32> to vector<4x64xf32>
    %111 = vector.shape_cast %97 : vector<4x64xf32> to vector<1x4x64xf32>
    tpu.vector_store %arg6[%c0_63, %c0_64, %c0_65], %111 {strides = array<i32>} : memref<1x4x64xf32, #tpu.memory_space<vmem>>, vector<1x4x64xf32>,
    return
  }
  func.func @transform_0(%arg0: i32) -> (i32, i32, i32) {
    %c0_i32 = arith.constant 0 : i32
    %c0_i32_0 = arith.constant 0 : i32
    %c0_i32_1 = arith.constant 0 : i32
    return %arg0, %c0_i32, %c0_i32_0 : i32, i32, i32
  }
  func.func @transform_1(%arg0: i32) -> (i32, i32, i32) {
    %c0_i32 = arith.constant 0 : i32
    %c0_i32_0 = arith.constant 0 : i32
    %c0_i32_1 = arith.constant 0 : i32
    %c0_i32_2 = arith.constant 0 : i32
    return %c0_i32, %c0_i32_0, %c0_i32_1 : i32, i32, i32
  }
  func.func @transform_2(%arg0: i32) -> (i32, i32) {
    %c0_i32 = arith.constant 0 : i32
    %c0_i32_0 = arith.constant 0 : i32
    %c0_i32_1 = arith.constant 0 : i32
    return %c0_i32, %c0_i32_0 : i32, i32
  }
  func.func @transform_3(%arg0: i32) -> (i32, i32, i32) {
    %c0_i32 = arith.constant 0 : i32
    %c0_i32_0 = arith.constant 0 : i32
    %c0_i32_1 = arith.constant 0 : i32
    %c0_i32_2 = arith.constant 0 : i32
    return %c0_i32, %c0_i32_0, %c0_i32_1 : i32, i32, i32
  }
  func.func @transform_4(%arg0: i32) -> (i32, i32) {
    %c0_i32 = arith.constant 0 : i32
    %c0_i32_0 = arith.constant 0 : i32
    %c0_i32_1 = arith.constant 0 : i32
    return %c0_i32, %c0_i32_0 : i32, i32
  }
  func.func @transform_5(%arg0: i32) -> (i32, i32, i32) {
    %c0_i32 = arith.constant 0 : i32
    %c0_i32_0 = arith.constant 0 : i32
    %c0_i32_1 = arith.constant 0 : i32
    return %arg0, %c0_i32, %c0_i32_0 : i32, i32, i32
  }
  func.func @transform_6(%arg0: i32) -> (i32, i32, i32) {
    %c0_i32 = arith.constant 0 : i32
    %c0_i32_0 = arith.constant 0 : i32
    %c0_i32_1 = arith.constant 0 : i32
    return %arg0, %c0_i32, %c0_i32_0 : i32, i32, i32
  }
}

</mosaic_0001>

<llo_original>
// kernel: tpu_custom_call.1
$region0: #{tpu_custom_call.1}
  #allocation0 [shape = 'u32[]', space=smem, size = 0x4, offset = 0x4, fixed_abs, tag = 'smem constant byte address 0x4 - core index']
  #allocation1 [shape = 'u32[144,128]{1,0:T(1,128)}', space=vmem, size = 0x12000, scoped, tag = 'internal scratch']
  %s0 = inlined_call_operand.vmem [shape: f32[2,4,256], index: 0, kind: input, shape index: {}]
  %s1 = inlined_call_operand.vmem [shape: f32[9,4,1], index: 1, kind: input, shape index: {}]
  %s2 = inlined_call_operand.vmem [shape: f32[4,4], index: 2, kind: input, shape index: {}]
  %s3 = inlined_call_operand.vmem [shape: f32[9,1,256], index: 3, kind: input, shape index: {}]
  %s4 = inlined_call_operand.vmem [shape: f32[256,64], index: 4, kind: input, shape index: {}]
  %s5 = inlined_call_operand.hbm [shape: f32[2,4,64], index: 5, kind: output, shape index: {0}]
  %s6 = inlined_call_operand.vmem [shape: f32[2,4,2], index: 6, kind: output, shape index: {1}]
  %7 = xla_tuple %s5, %s6
  %s8 = sld [smem:[#allocation0]]
  $region61: #{tpu_custom_call.1} parent=0
    _
  %s10 = ssub.s32 1, %s8
  %s11 = scalar_select 0, %s10, %s8
  $region1: #{tpu_custom_call.1} parent=0
    #allocation2 [shape = 'u8[4096]{0}', space=vmem, size = 0x1000, scoped, tag = 'output window, operand 0']
    #allocation3 [shape = 's32[2]{0}', space=sflag, size = 0x8, scoped, tag = 'scoped memory for tpu_custom_call.1']
    %12 = vsyncpa [#allocation3], 0
    %s13 = scalar_lea.sflag [#allocation3], 1
    %14 = vsyncpa %s13, 0
    loop: start=0, step=1, limit=4
    $region2: #{tpu_custom_call.1} parent=1 // loop_pre_header
      _
    $region3: #{tpu_custom_call.1} parent=1 // loop_header
      %s16 = sphi 0, %s20
      %p17 = scmp.ge.s32.totalorder %s16, 4
      %s26 = sphi 0, %s28
      %s29 = sphi 0, %s26
      %s30 = sphi 0, %s29
      %s46 = sphi 0, %s30
      %s50 = sphi 0, %s50
      %s52 = sphi 0, %s50
      %s53 = sphi 0, %s52
      %s67 = sphi 0, %s53
      %s71 = sphi 0, %s71
      %s73 = sphi 0, %s71
      %s74 = sphi 0, %s73
      %s88 = sphi 0, %s74
      %s92 = sphi 0, %s92
      %s94 = sphi 0, %s92
      %s95 = sphi 0, %s94
      %s109 = sphi 0, %s95
      %s113 = sphi 0, %s113
      %s115 = sphi 0, %s113
      %s116 = sphi 0, %s115
      %s130 = sphi 0, %s116
      %s136 = sphi 0, %s138
      %s139 = sphi 0, %s136
      %s140 = sphi 0, %s139
      %s156 = sphi 0, %s140
      %s162 = sphi 0, %s164
      %s165 = sphi 0, %s162
      %s166 = sphi 0, %s165
      %s182 = sphi 0, %s166
    $region4: #{tpu_custom_call.1} parent=1 // loop_header_branch
      %19 = sbr.rel (%p17) target = $region8
    $region5: #{tpu_custom_call.1} parent=1 // loop_body
      %s21 = ssub.s32 %s16, 1
      %s22 = ssub.s32 %s16, 2
      %s23 = sadd.s32 %s16, 1
      %s24 = ssub.s32 %s16, %s23
      %p25 = scmp.eq.s32.totalorder %s24, 0
      %s27 = sadd.s32 %s26, 1
      %s28 = scalar_select %p25, %s26, %s27
      %p31 = pneg %p25
      %p32 = scmp.eq.s32.totalorder %s16, 1
      %p33 = por %p31, %p32
      %p34 = scmp.ne.s32.totalorder %s26, %s29
      %p35 = scmp.eq.s32.totalorder %s16, 0
      %p36 = por %p34, %p35
      %p37 = scmp.ne.s32.totalorder %s26, %s29
      %p38 = scmp.eq.s32.totalorder %s21, 1
      %p39 = por %p37, %p38
      %p40 = scmp.ne.s32.totalorder %s29, %s30
      %p41 = scmp.eq.s32.totalorder %s21, 0
      %p42 = por %p40, %p41
      %p43 = scmp.ne.s32.totalorder %s29, %s30
      %p44 = scmp.eq.s32.totalorder %s22, 1
      %p45 = por %p43, %p44
      %p47 = scmp.ne.s32.totalorder %s30, %s46
      %p48 = scmp.eq.s32.totalorder %s22, 0
      %p49 = por %p47, %p48
      %s51 = sadd.s32 %s50, 1
      %p54 = scmp.eq.s32.totalorder %s16, 1
      %p55 = scmp.ne.s32.totalorder %s50, %s52
      %p56 = scmp.eq.s32.totalorder %s16, 0
      %p57 = por %p55, %p56
      %p58 = scmp.ne.s32.totalorder %s50, %s52
      %p59 = scmp.eq.s32.totalorder %s21, 1
      %p60 = por %p58, %p59
      %p61 = scmp.ne.s32.totalorder %s52, %s53
      %p62 = scmp.eq.s32.totalorder %s21, 0
      %p63 = por %p61, %p62
      %p64 = scmp.ne.s32.totalorder %s52, %s53
      %p65 = scmp.eq.s32.totalorder %s22, 1
      %p66 = por %p64, %p65
      %p68 = scmp.ne.s32.totalorder %s53, %s67
      %p69 = scmp.eq.s32.totalorder %s22, 0
      %p70 = por %p68, %p69
      %s72 = sadd.s32 %s71, 1
      %p75 = scmp.eq.s32.totalorder %s16, 1
      %p76 = scmp.ne.s32.totalorder %s71, %s73
      %p77 = scmp.eq.s32.totalorder %s16, 0
      %p78 = por %p76, %p77
      %p79 = scmp.ne.s32.totalorder %s71, %s73
      %p80 = scmp.eq.s32.totalorder %s21, 1
      %p81 = por %p79, %p80
      %p82 = scmp.ne.s32.totalorder %s73, %s74
      %p83 = scmp.eq.s32.totalorder %s21, 0
      %p84 = por %p82, %p83
      %p85 = scmp.ne.s32.totalorder %s73, %s74
      %p86 = scmp.eq.s32.totalorder %s22, 1
      %p87 = por %p85, %p86
      %p89 = scmp.ne.s32.totalorder %s74, %s88
      %p90 = scmp.eq.s32.totalorder %s22, 0
      %p91 = por %p89, %p90
      %s93 = sadd.s32 %s92, 1
      %p96 = scmp.eq.s32.totalorder %s16, 1
      %p97 = scmp.ne.s32.totalorder %s92, %s94
      %p98 = scmp.eq.s32.totalorder %s16, 0
      %p99 = por %p97, %p98
      %p100 = scmp.ne.s32.totalorder %s92, %s94
      %p101 = scmp.eq.s32.totalorder %s21, 1
      %p102 = por %p100, %p101
      %p103 = scmp.ne.s32.totalorder %s94, %s95
      %p104 = scmp.eq.s32.totalorder %s21, 0
      %p105 = por %p103, %p104
      %p106 = scmp.ne.s32.totalorder %s94, %s95
      %p107 = scmp.eq.s32.totalorder %s22, 1
      %p108 = por %p106, %p107
      %p110 = scmp.ne.s32.totalorder %s95, %s109
      %p111 = scmp.eq.s32.totalorder %s22, 0
      %p112 = por %p110, %p111
      %s114 = sadd.s32 %s113, 1
      %p117 = scmp.eq.s32.totalorder %s16, 1
      %p118 = scmp.ne.s32.totalorder %s113, %s115
      %p119 = scmp.eq.s32.totalorder %s16, 0
      %p120 = por %p118, %p119
      %p121 = scmp.ne.s32.totalorder %s113, %s115
      %p122 = scmp.eq.s32.totalorder %s21, 1
      %p123 = por %p121, %p122
      %p124 = scmp.ne.s32.totalorder %s115, %s116
      %p125 = scmp.eq.s32.totalorder %s21, 0
      %p126 = por %p124, %p125
      %p127 = scmp.ne.s32.totalorder %s115, %s116
      %p128 = scmp.eq.s32.totalorder %s22, 1
      %p129 = por %p127, %p128
      %p131 = scmp.ne.s32.totalorder %s116, %s130
      %p132 = scmp.eq.s32.totalorder %s22, 0
      %p133 = por %p131, %p132
      %s134 = ssub.s32 %s16, %s23
      %p135 = scmp.eq.s32.totalorder %s134, 0
      %s137 = sadd.s32 %s136, 1
      %s138 = scalar_select %p135, %s136, %s137
      %p141 = pneg %p135
      %p142 = scmp.eq.s32.totalorder %s16, 1
      %p143 = por %p141, %p142
      %p144 = scmp.ne.s32.totalorder %s136, %s139
      %p145 = scmp.eq.s32.totalorder %s16, 0
      %p146 = por %p144, %p145
      %p147 = scmp.ne.s32.totalorder %s136, %s139
      %p148 = scmp.eq.s32.totalorder %s21, 1
      %p149 = por %p147, %p148
      %p150 = scmp.ne.s32.totalorder %s139, %s140
      %p151 = scmp.eq.s32.totalorder %s21, 0
      %p152 = por %p150, %p151
      %p153 = scmp.ne.s32.totalorder %s139, %s140
      %p154 = scmp.eq.s32.totalorder %s22, 1
      %p155 = por %p153, %p154
      %p157 = scmp.ne.s32.totalorder %s140, %s156
      %p158 = scmp.eq.s32.totalorder %s22, 0
      %p159 = por %p157, %p158
      %s160 = ssub.s32 %s16, %s23
      %p161 = scmp.eq.s32.totalorder %s160, 0
      %s163 = sadd.s32 %s162, 1
      %s164 = scalar_select %p161, %s162, %s163
      %p167 = pneg %p161
      %p168 = scmp.eq.s32.totalorder %s16, 1
      %p169 = por %p167, %p168
      %p170 = scmp.ne.s32.totalorder %s162, %s165
      %p171 = scmp.eq.s32.totalorder %s16, 0
      %p172 = por %p170, %p171
      %p173 = scmp.ne.s32.totalorder %s162, %s165
      %p174 = scmp.eq.s32.totalorder %s21, 1
      %p175 = por %p173, %p174
      %p176 = scmp.ne.s32.totalorder %s165, %s166
      %p177 = scmp.eq.s32.totalorder %s21, 0
      %p178 = por %p176, %p177
      %p179 = scmp.ne.s32.totalorder %s165, %s166
      %p180 = scmp.eq.s32.totalorder %s22, 1
      %p181 = por %p179, %p180
      %p183 = scmp.ne.s32.totalorder %s166, %s182
      %p184 = scmp.eq.s32.totalorder %s22, 0
      %p185 = por %p183, %p184
      %p186 = scmp.le.s32.totalorder 1, %s16
      %p187 = scmp.lt.s32.totalorder %s16, 3
      %p188 = pnand %p186, %p187
      %p189 = pneg %p188
      // Predicated region
      $region9: #{tpu_custom_call.1} parent=5 // pred_check
        _
      $region10: #{tpu_custom_call.1} parent=5 // pred_check_branch
        %191 = sbr.rel (%p188) target = $region12
      $region11: #{tpu_custom_call.1} parent=5 // pred_region
        %s192 = ssub.s32 %s16, 1
        // Predicated region
        $region13: #{tpu_custom_call.1} parent=11 // pred_check
          %p193 = pneg %p63
        $region14: #{tpu_custom_call.1} parent=11 // pred_check_branch
          %195 = sbr.rel (%p193) target = $region16
        $region15: #{tpu_custom_call.1} parent=11 // pred_region
          _
        $region16: #{tpu_custom_call.1} parent=11 // pred_fallthru
          _
        // Predicated region
        $region17: #{tpu_custom_call.1} parent=11 // pred_check
          %p196 = pneg %p84
        $region18: #{tpu_custom_call.1} parent=11 // pred_check_branch
          %198 = sbr.rel (%p196) target = $region20
        $region19: #{tpu_custom_call.1} parent=11 // pred_region
          _
        $region20: #{tpu_custom_call.1} parent=11 // pred_fallthru
          _
        // Predicated region
        $region21: #{tpu_custom_call.1} parent=11 // pred_check
          %p199 = pneg %p105
        $region22: #{tpu_custom_call.1} parent=11 // pred_check_branch
          %201 = sbr.rel (%p199) target = $region24
        $region23: #{tpu_custom_call.1} parent=11 // pred_region
          _
        $region24: #{tpu_custom_call.1} parent=11 // pred_fallthru
          _
        // Predicated region
        $region25: #{tpu_custom_call.1} parent=11 // pred_check
          %p202 = pneg %p126
        $region26: #{tpu_custom_call.1} parent=11 // pred_check_branch
          %204 = sbr.rel (%p202) target = $region28
        $region27: #{tpu_custom_call.1} parent=11 // pred_region
          _
        $region28: #{tpu_custom_call.1} parent=11 // pred_fallthru
          _
      $region12: #{tpu_custom_call.1} parent=5 // pred_fallthru
        _
      %p205 = scmp.lt.s32.totalorder %s16, 2
      // Predicated region
      $region29: #{tpu_custom_call.1} parent=5 // pred_check
        %p206 = pneg %p205
      $region30: #{tpu_custom_call.1} parent=5 // pred_check_branch
        %208 = sbr.rel (%p206) target = $region32
      $region31: #{tpu_custom_call.1} parent=5 // pred_region
        // Predicated region
        $region33: #{tpu_custom_call.1} parent=31 // pred_check
          %p209 = pneg %p36
        $region34: #{tpu_custom_call.1} parent=31 // pred_check_branch
          %211 = sbr.rel (%p209) target = $region36
        $region35: #{tpu_custom_call.1} parent=31 // pred_region
          %p212 = scmp.lt.s32.totalorder %s16, 1
          %s213 = scalar_select %p212, %s16, 1
          %s214 = smul.addr %s213, 2
          %s215 = smul.addr %s214, 4
          %s216 = scalar_lea.vmem %s0, %s215
        $region36: #{tpu_custom_call.1} parent=31 // pred_fallthru
          _
      $region32: #{tpu_custom_call.1} parent=5 // pred_fallthru
        _
      %p217 = scmp.le.s32.totalorder 1, %s16
      %p218 = scmp.lt.s32.totalorder %s16, 3
      %p219 = pnand %p217, %p218
      %p220 = pneg %p219
      // Predicated region
      $region37: #{tpu_custom_call.1} parent=5 // pred_check
        _
      $region38: #{tpu_custom_call.1} parent=5 // pred_check_branch
        %222 = sbr.rel (%p219) target = $region40
      $region39: #{tpu_custom_call.1} parent=5 // pred_region
        %s223 = ssub.s32 %s16, 1
        %p224 = scmp.lt.s32.totalorder %s21, 1
        %s225 = scalar_select %p224, %s21, 1
        %s226 = smul.addr %s225, 2
        %s227 = smul.addr %s226, 4
        %s228 = scalar_lea.vmem %s0, %s227
        %p229 = pneg %p42
        %p230 = pneg %p39
        %p231 = pneg %p63
        %p232 = pneg %p60
        %p233 = pneg %p84
        %p234 = pneg %p81
        %p235 = pneg %p105
        %p236 = pneg %p102
        %p237 = pneg %p126
        %p238 = pneg %p123
        %p239 = pneg %p152
        %p240 = pneg %p149
        %s241 = sand.u32 %s139, 1
        %s242 = scalar_lea.sflag [#allocation3], %s241
        %s243 = sand.u32 %s139, 1
        %s244 = smul.addr %s243, 4
        %s245 = scalar_lea.vmem [#allocation2], %s244
        %p246 = pneg %p178
        %p247 = pneg %p175
        %p248 = scmp.lt.s32.totalorder %s21, 1
        %s249 = scalar_select %p248, %s21, 1
        %s250 = smul.addr %s249, 4
        %s251 = scalar_lea.vmem %s6, %s250
        %p252 = scmp.lt.s32.totalorder %s21, 1
        %s253 = scalar_select %p252, %s21, 1
        %s254 = smul.addr %s253, 2
        %s255 = smul.addr %s254, 4
        %s256 = scalar_lea.vmem %s0, %s255
        %p257 = scmp.lt.s32.totalorder %s21, 1
        %s258 = scalar_select %p257, %s21, 1
        %s259 = smul.addr %s258, 4
        %s260 = scalar_lea.vmem %s6, %s259
        %v261 = vld [vmem:[%s256] sm:$0xff]
        %v262 = vmax.f32 %v261, 0.0
        %v264 = vcombine.high %v262, %v262
        %266 = vrot.lane.b32.xlu0 %v262, 17
        %v267 = vpop.permute.xlu0 %266
        %268 = vrot.lane.b32.xlu0 %v264, 17
        %v269 = vpop.permute.xlu0 %268
        %v270 = vlaneseq
        %v271 = vand.u32 %v270, 127
        %vm272 = vcmp.lt.s32.totalorder %v271, 17
        %v273 = vsel %vm272, %v267, %v269
        %v274 = vsel %vm272, %v269, %v267
        %v275 = vld [vmem:[%s3] sm:$0x3]
        %v277 = vlaneseq
        %v278 = vshrl.u32 %v277, 7
        %v279 = vsub.s32 0, %v278
        %v280 = vrot.slane %v275, %v279
        %v281 = vlaneseq
        %v282 = vshrl.u32 %v281, 7
        %v283 = vsub.s32 1, %v282
        %v284 = vrot.slane %v275, %v283
        %v287 = vmul.f32 %v274, %v280
        %v288 = vmul.f32 %v273, %v284
        %v289 = vld [vmem:[%s1] sm:$0xf]
        %291 = vset.pattern.permute.xlu0 0
        %292 = vperm.xlu0 %291, %v289
        %v293 = vpop.permute.xlu0 %292
        %v295 = vmul.f32 %v287, %v293
        %v296 = vmul.f32 %v288, %v293
        %v297 = vadd.f32 %v295, 0.0
        %v298 = vadd.f32 %v296, 0.0
        %299 = vrot.lane.b32.xlu0 %v262, 16
        %v300 = vpop.permute.xlu0 %299
        %301 = vrot.lane.b32.xlu0 %v264, 16
        %v302 = vpop.permute.xlu0 %301
        %vm303 = vcmp.lt.s32.totalorder %v271, 16
        %v304 = vsel %vm303, %v300, %v302
        %v305 = vsel %vm303, %v302, %v300
        %s306 = scalar_lea.vmem %s3, 2
        %v307 = vld [vmem:[%s306] sm:$0x3]
        %v309 = vlaneseq
        %v310 = vshrl.u32 %v309, 7
        %v311 = vsub.s32 0, %v310
        %v312 = vrot.slane %v307, %v311
        %v313 = vlaneseq
        %v314 = vshrl.u32 %v313, 7
        %v315 = vsub.s32 1, %v314
        %v316 = vrot.slane %v307, %v315
        %v319 = vmul.f32 %v305, %v312
        %v320 = vmul.f32 %v304, %v316
        %s321 = scalar_lea.vmem %s1, 4
        %v322 = vld [vmem:[%s321] sm:$0xf]
        %324 = vset.pattern.permute.xlu0 0
        %325 = vperm.xlu0 %324, %v322
        %v326 = vpop.permute.xlu0 %325
        %v328 = vmul.f32 %v319, %v326
        %v329 = vmul.f32 %v320, %v326
        %v330 = vadd.f32 %v297, %v328
        %v331 = vadd.f32 %v298, %v329
        %332 = vrot.lane.b32.xlu0 %v262, 15
        %v333 = vpop.permute.xlu0 %332
        %334 = vrot.lane.b32.xlu0 %v264, 15
        %v335 = vpop.permute.xlu0 %334
        %vm336 = vcmp.lt.s32.totalorder %v271, 15
        %v337 = vsel %vm336, %v333, %v335
        %v338 = vsel %vm336, %v335, %v333
        %s339 = scalar_lea.vmem %s3, 4
        %v340 = vld [vmem:[%s339] sm:$0x3]
        %v342 = vlaneseq
        %v343 = vshrl.u32 %v342, 7
        %v344 = vsub.s32 0, %v343
        %v345 = vrot.slane %v340, %v344
        %v346 = vlaneseq
        %v347 = vshrl.u32 %v346, 7
        %v348 = vsub.s32 1, %v347
        %v349 = vrot.slane %v340, %v348
        %v352 = vmul.f32 %v338, %v345
        %v353 = vmul.f32 %v337, %v349
        %s354 = scalar_lea.vmem %s1, 8
        %v355 = vld [vmem:[%s354] sm:$0xf]
        %357 = vset.pattern.permute.xlu0 0
        %358 = vperm.xlu0 %357, %v355
        %v359 = vpop.permute.xlu0 %358
        %v361 = vmul.f32 %v352, %v359
        %v362 = vmul.f32 %v353, %v359
        %v363 = vadd.f32 %v330, %v361
        %v364 = vadd.f32 %v331, %v362
        %365 = vrot.lane.b32.xlu0 %v262, 1
        %v366 = vpop.permute.xlu0 %365
        %367 = vrot.lane.b32.xlu0 %v264, 1
        %v368 = vpop.permute.xlu0 %367
        %vm369 = vcmp.lt.s32.totalorder %v271, 1
        %v370 = vsel %vm369, %v366, %v368
        %v371 = vsel %vm369, %v368, %v366
        %s372 = scalar_lea.vmem %s3, 6
        %v373 = vld [vmem:[%s372] sm:$0x3]
        %v375 = vlaneseq
        %v376 = vshrl.u32 %v375, 7
        %v377 = vsub.s32 0, %v376
        %v378 = vrot.slane %v373, %v377
        %v379 = vlaneseq
        %v380 = vshrl.u32 %v379, 7
        %v381 = vsub.s32 1, %v380
        %v382 = vrot.slane %v373, %v381
        %v385 = vmul.f32 %v371, %v378
        %v386 = vmul.f32 %v370, %v382
        %s387 = scalar_lea.vmem %s1, 12
        %v388 = vld [vmem:[%s387] sm:$0xf]
        %390 = vset.pattern.permute.xlu0 0
        %391 = vperm.xlu0 %390, %v388
        %v392 = vpop.permute.xlu0 %391
        %v394 = vmul.f32 %v385, %v392
        %v395 = vmul.f32 %v386, %v392
        %v396 = vadd.f32 %v363, %v394
        %v397 = vadd.f32 %v364, %v395
        %s398 = scalar_lea.vmem %s3, 8
        %v399 = vld [vmem:[%s398] sm:$0x3]
        %v401 = vlaneseq
        %v402 = vshrl.u32 %v401, 7
        %v403 = vsub.s32 0, %v402
        %v404 = vrot.slane %v399, %v403
        %v405 = vlaneseq
        %v406 = vshrl.u32 %v405, 7
        %v407 = vsub.s32 1, %v406
        %v408 = vrot.slane %v399, %v407
        %v409 = vcombine.low %v404, %v408
        %v411 = vmul.f32 %v262, %v409
        %s412 = scalar_lea.vmem %s1, 16
        %v413 = vld [vmem:[%s412] sm:$0xf]
        %415 = vset.pattern.permute.xlu0 0
        %416 = vperm.xlu0 %415, %v413
        %v417 = vpop.permute.xlu0 %416
        %v419 = vunpack.c.l.s4 839922192
        %v420 = vunpack.c.0.s8 %v419
        %v421 = vlaneseq
        %v422 = vshrl.u32 %v421, 7
        %v423 = vsub.s32 %v420, %v422
        %v424 = vrot.slane %v417, %v423
        %v426 = vmul.f32 %v411, %v424
        %v428 = vcombine.high %v426, %v426
        %v430 = vadd.f32 %v396, %v426
        %v431 = vadd.f32 %v397, %v428
        %432 = vrot.lane.b32.xlu0 %v262, 127
        %v433 = vpop.permute.xlu0 %432
        %434 = vrot.lane.b32.xlu0 %v264, 127
        %v435 = vpop.permute.xlu0 %434
        %vm436 = vcmp.lt.s32.totalorder %v271, 127
        %v437 = vsel %vm436, %v433, %v435
        %v438 = vsel %vm436, %v435, %v433
        %s439 = scalar_lea.vmem %s3, 10
        %v440 = vld [vmem:[%s439] sm:$0x3]
        %v442 = vlaneseq
        %v443 = vshrl.u32 %v442, 7
        %v444 = vsub.s32 0, %v443
        %v445 = vrot.slane %v440, %v444
        %v446 = vlaneseq
        %v447 = vshrl.u32 %v446, 7
        %v448 = vsub.s32 1, %v447
        %v449 = vrot.slane %v440, %v448
        %v452 = vmul.f32 %v437, %v445
        %v453 = vmul.f32 %v438, %v449
        %s454 = scalar_lea.vmem %s1, 20
        %v455 = vld [vmem:[%s454] sm:$0xf]
        %457 = vset.pattern.permute.xlu0 0
        %458 = vperm.xlu0 %457, %v455
        %v459 = vpop.permute.xlu0 %458
        %v461 = vmul.f32 %v452, %v459
        %v462 = vmul.f32 %v453, %v459
        %v463 = vadd.f32 %v430, %v461
        %v464 = vadd.f32 %v431, %v462
        %465 = vrot.lane.b32.xlu0 %v262, 113
        %v466 = vpop.permute.xlu0 %465
        %467 = vrot.lane.b32.xlu0 %v264, 113
        %v468 = vpop.permute.xlu0 %467
        %vm469 = vcmp.lt.s32.totalorder %v271, 113
        %v470 = vsel %vm469, %v466, %v468
        %v471 = vsel %vm469, %v468, %v466
        %s472 = scalar_lea.vmem %s3, 12
        %v473 = vld [vmem:[%s472] sm:$0x3]
        %v475 = vlaneseq
        %v476 = vshrl.u32 %v475, 7
        %v477 = vsub.s32 0, %v476
        %v478 = vrot.slane %v473, %v477
        %v479 = vlaneseq
        %v480 = vshrl.u32 %v479, 7
        %v481 = vsub.s32 1, %v480
        %v482 = vrot.slane %v473, %v481
        %v485 = vmul.f32 %v470, %v478
        %v486 = vmul.f32 %v471, %v482
        %s487 = scalar_lea.vmem %s1, 24
        %v488 = vld [vmem:[%s487] sm:$0xf]
        %490 = vset.pattern.permute.xlu0 0
        %491 = vperm.xlu0 %490, %v488
        %v492 = vpop.permute.xlu0 %491
        %v494 = vmul.f32 %v485, %v492
        %v495 = vmul.f32 %v486, %v492
        %v496 = vadd.f32 %v463, %v494
        %v497 = vadd.f32 %v464, %v495
        %498 = vrot.lane.b32.xlu0 %v262, 112
        %v499 = vpop.permute.xlu0 %498
        %500 = vrot.lane.b32.xlu0 %v264, 112
        %v501 = vpop.permute.xlu0 %500
        %vm502 = vcmp.lt.s32.totalorder %v271, 112
        %v503 = vsel %vm502, %v499, %v501
        %v504 = vsel %vm502, %v501, %v499
        %s505 = scalar_lea.vmem %s3, 14
        %v506 = vld [vmem:[%s505] sm:$0x3]
        %v508 = vlaneseq
        %v509 = vshrl.u32 %v508, 7
        %v510 = vsub.s32 0, %v509
        %v511 = vrot.slane %v506, %v510
        %v512 = vlaneseq
        %v513 = vshrl.u32 %v512, 7
        %v514 = vsub.s32 1, %v513
        %v515 = vrot.slane %v506, %v514
        %v518 = vmul.f32 %v503, %v511
        %v519 = vmul.f32 %v504, %v515
        %s520 = scalar_lea.vmem %s1, 28
        %v521 = vld [vmem:[%s520] sm:$0xf]
        %523 = vset.pattern.permute.xlu0 0
        %524 = vperm.xlu0 %523, %v521
        %v525 = vpop.permute.xlu0 %524
        %v527 = vmul.f32 %v518, %v525
        %v528 = vmul.f32 %v519, %v525
        %v529 = vadd.f32 %v496, %v527
        %v530 = vadd.f32 %v497, %v528
        %531 = vrot.lane.b32.xlu0 %v262, 111
        %v532 = vpop.permute.xlu0 %531
        %533 = vrot.lane.b32.xlu0 %v264, 111
        %v534 = vpop.permute.xlu0 %533
        %vm535 = vcmp.lt.s32.totalorder %v271, 111
        %v536 = vsel %vm535, %v532, %v534
        %v537 = vsel %vm535, %v534, %v532
        %s538 = scalar_lea.vmem %s3, 16
        %v539 = vld [vmem:[%s538] sm:$0x3]
        %v541 = vlaneseq
        %v542 = vshrl.u32 %v541, 7
        %v543 = vsub.s32 0, %v542
        %v544 = vrot.slane %v539, %v543
        %v545 = vlaneseq
        %v546 = vshrl.u32 %v545, 7
        %v547 = vsub.s32 1, %v546
        %v548 = vrot.slane %v539, %v547
        %v551 = vmul.f32 %v536, %v544
        %v552 = vmul.f32 %v537, %v548
        %s553 = scalar_lea.vmem %s1, 32
        %v554 = vld [vmem:[%s553] sm:$0xf]
        %556 = vset.pattern.permute.xlu0 0
        %557 = vperm.xlu0 %556, %v554
        %v558 = vpop.permute.xlu0 %557
        %v560 = vmul.f32 %v551, %v558
        %v561 = vmul.f32 %v552, %v558
        %v562 = vadd.f32 %v529, %v560
        %v563 = vadd.f32 %v530, %v561
        %v564 = vld [vmem:[%s2] sm:$0xf]
        %vm565 = vcmask 31744
        %v567 = vsel %vm565, %v564, 0
        %vm569 = vcmask 1043456
        %v571 = vsel %vm569, %v562, 0
        %v574 = vsel %vm569, %v563, 0
        %576 = vmatprep.subr.mxu0 0.0
        %577 = vmatpush1.msra.mxu0 0.0
        %578 = vmatprep.subr.mxu0 0.0
        %579 = vmatpush1.msra.mxu0 0.0
        %580 = vmatprep.subr.mxu0 0.0
        %581 = vmatpush1.msra.mxu0 0.0
        %582 = vmatprep.subr.mxu0 0.0
        %583 = vmatpush1.msra.mxu0 0.0
        %584 = vmatprep.subr.mxu0 0.0
        %585 = vmatpush1.msra.mxu0 0.0
        %586 = vmatprep.subr.mxu0 0.0
        %587 = vmatpush1.msra.mxu0 0.0
        %588 = vmatprep.subr.mxu0 0.0
        %589 = vmatpush1.msra.mxu0 0.0
        %590 = vmatprep.subr.mxu0 0.0
        %591 = vmatpush1.msra.mxu0 0.0
        %592 = vmatprep.subr.mxu0 0.0
        %593 = vmatpush1.msra.mxu0 0.0
        %594 = vmatprep.subr.mxu0 0.0
        %595 = vmatpush1.msra.mxu0 0.0
        %596 = vmatprep.subr.mxu0 0.0
        %597 = vmatpush1.msra.mxu0 0.0
        %598 = vmatprep.subr.mxu0 0.0
        %599 = vmatpush1.msra.mxu0 0.0
        %600 = vmatprep.subr.mxu0 0.0
        %601 = vmatpush1.msra.mxu0 0.0
        %602 = vmatprep.subr.mxu0 0.0
        %603 = vmatpush1.msra.mxu0 0.0
        %604 = vmatprep.subr.mxu0 0.0
        %605 = vmatpush1.msra.mxu0 0.0
        %606 = vmatprep.subr.mxu0 %v574
        %607 = vmatpush1.msra.mxu0 %v571
        %608 = vmatprep.subr.mxu0 0.0
        %609 = vmatpush2.msra.mxu0 0.0
        %610 = vmatprep.subr.mxu0 0.0
        %611 = vmatpush2.msra.mxu0 0.0
        %612 = vmatprep.subr.mxu0 0.0
        %613 = vmatpush2.msra.mxu0 0.0
        %614 = vmatprep.subr.mxu0 0.0
        %615 = vmatpush2.msra.mxu0 0.0
        %616 = vmatprep.subr.mxu0 0.0
        %617 = vmatpush2.msra.mxu0 0.0
        %618 = vmatprep.subr.mxu0 0.0
        %619 = vmatpush2.msra.mxu0 0.0
        %620 = vmatprep.subr.mxu0 0.0
        %621 = vmatpush2.msra.mxu0 0.0
        %622 = vmatprep.subr.mxu0 0.0
        %623 = vmatpush2.msra.mxu0 0.0
        %624 = vmatprep.subr.mxu0 0.0
        %625 = vmatpush2.msra.mxu0 0.0
        %626 = vmatprep.subr.mxu0 0.0
        %627 = vmatpush2.msra.mxu0 0.0
        %628 = vmatprep.subr.mxu0 0.0
        %629 = vmatpush2.msra.mxu0 0.0
        %630 = vmatprep.subr.mxu0 0.0
        %631 = vmatpush2.msra.mxu0 0.0
        %632 = vmatprep.subr.mxu0 0.0
        %633 = vmatpush2.msra.mxu0 0.0
        %634 = vmatprep.subr.mxu0 0.0
        %635 = vmatpush2.msra.mxu0 0.0
        %636 = vmatprep.subr.mxu0 0.0
        %637 = vmatpush2.msra.mxu0 0.0
        %638 = vmatprep.subr.mxu0 0.0
        %639 = vmatpush2.msra.mxu0 0.0
        %640 = vmatprep.mubr.f32.mxu0 0.0
        %641 = vmatmul.mubr.f32.gmra.mxu0 %v567
        %v642 = vpop.f32.mrf.mxu0
        %v643 = vadd.f32 0.0, %v642
        %v644 = vpop.f32.mrf.mxu0
        %v645 = vadd.f32 0.0, %v644
        %646 = vdwg.mxu0
        %v647 = vld [vmem:[%s4] sm:$0xff]
        %v648 = vld [vmem:[%s4 + $0x8] sm:$0xff]
        %v649 = vld [vmem:[%s4 + $0x10] sm:$0xff]
        %v650 = vld [vmem:[%s4 + $0x18] sm:$0xff]
        %v651 = vld [vmem:[%s4 + $0x20] sm:$0xff]
        %v652 = vld [vmem:[%s4 + $0x28] sm:$0xff]
        %v653 = vld [vmem:[%s4 + $0x30] sm:$0xff]
        %v654 = vld [vmem:[%s4 + $0x38] sm:$0xff]
        %v655 = vld [vmem:[%s4 + $0x40] sm:$0xff]
        %v656 = vld [vmem:[%s4 + $0x48] sm:$0xff]
        %v657 = vld [vmem:[%s4 + $0x50] sm:$0xff]
        %v658 = vld [vmem:[%s4 + $0x58] sm:$0xff]
        %v659 = vld [vmem:[%s4 + $0x60] sm:$0xff]
        %v660 = vld [vmem:[%s4 + $0x68] sm:$0xff]
        %v661 = vld [vmem:[%s4 + $0x70] sm:$0xff]
        %v662 = vld [vmem:[%s4 + $0x78] sm:$0xff]
        %v663 = vld [vmem:[%s4 + $0x80] sm:$0xff]
        %v664 = vld [vmem:[%s4 + $0x88] sm:$0xff]
        %v665 = vld [vmem:[%s4 + $0x90] sm:$0xff]
        %v666 = vld [vmem:[%s4 + $0x98] sm:$0xff]
        %v667 = vld [vmem:[%s4 + $0xa0] sm:$0xff]
        %v668 = vld [vmem:[%s4 + $0xa8] sm:$0xff]
        %v669 = vld [vmem:[%s4 + $0xb0] sm:$0xff]
        %v670 = vld [vmem:[%s4 + $0xb8] sm:$0xff]
        %v671 = vld [vmem:[%s4 + $0xc0] sm:$0xff]
        %v672 = vld [vmem:[%s4 + $0xc8] sm:$0xff]
        %v673 = vld [vmem:[%s4 + $0xd0] sm:$0xff]
        %v674 = vld [vmem:[%s4 + $0xd8] sm:$0xff]
        %v675 = vld [vmem:[%s4 + $0xe0] sm:$0xff]
        %v676 = vld [vmem:[%s4 + $0xe8] sm:$0xff]
        %v677 = vld [vmem:[%s4 + $0xf0] sm:$0xff]
        %v678 = vld [vmem:[%s4 + $0xf8] sm:$0xff]
        %679 = vmatprep.subr.mxu0 0.0
        %680 = vmatpush1.msra.mxu0 %v662
        %681 = vmatprep.subr.mxu0 0.0
        %682 = vmatpush1.msra.mxu0 %v661
        %683 = vmatprep.subr.mxu0 0.0
        %684 = vmatpush1.msra.mxu0 %v660
        %685 = vmatprep.subr.mxu0 0.0
        %686 = vmatpush1.msra.mxu0 %v659
        %687 = vmatprep.subr.mxu0 0.0
        %688 = vmatpush1.msra.mxu0 %v658
        %689 = vmatprep.subr.mxu0 0.0
        %690 = vmatpush1.msra.mxu0 %v657
        %691 = vmatprep.subr.mxu0 0.0
        %692 = vmatpush1.msra.mxu0 %v656
        %693 = vmatprep.subr.mxu0 0.0
        %694 = vmatpush1.msra.mxu0 %v655
        %695 = vmatprep.subr.mxu0 0.0
        %696 = vmatpush1.msra.mxu0 %v654
        %697 = vmatprep.subr.mxu0 0.0
        %698 = vmatpush1.msra.mxu0 %v653
        %699 = vmatprep.subr.mxu0 0.0
        %700 = vmatpush1.msra.mxu0 %v652
        %701 = vmatprep.subr.mxu0 0.0
        %702 = vmatpush1.msra.mxu0 %v651
        %703 = vmatprep.subr.mxu0 0.0
        %704 = vmatpush1.msra.mxu0 %v650
        %705 = vmatprep.subr.mxu0 0.0
        %706 = vmatpush1.msra.mxu0 %v649
        %707 = vmatprep.subr.mxu0 0.0
        %708 = vmatpush1.msra.mxu0 %v648
        %709 = vmatprep.subr.mxu0 0.0
        %710 = vmatpush1.msra.mxu0 %v647
        %711 = vmatprep.subr.mxu0 0.0
        %712 = vmatpush2.msra.mxu0 %v678
        %713 = vmatprep.subr.mxu0 0.0
        %714 = vmatpush2.msra.mxu0 %v677
        %715 = vmatprep.subr.mxu0 0.0
        %716 = vmatpush2.msra.mxu0 %v676
        %717 = vmatprep.subr.mxu0 0.0
        %718 = vmatpush2.msra.mxu0 %v675
        %719 = vmatprep.subr.mxu0 0.0
        %720 = vmatpush2.msra.mxu0 %v674
        %721 = vmatprep.subr.mxu0 0.0
        %722 = vmatpush2.msra.mxu0 %v673
        %723 = vmatprep.subr.mxu0 0.0
        %724 = vmatpush2.msra.mxu0 %v672
        %725 = vmatprep.subr.mxu0 0.0
        %726 = vmatpush2.msra.mxu0 %v671
        %727 = vmatprep.subr.mxu0 0.0
        %728 = vmatpush2.msra.mxu0 %v670
        %729 = vmatprep.subr.mxu0 0.0
        %730 = vmatpush2.msra.mxu0 %v669
        %731 = vmatprep.subr.mxu0 0.0
        %732 = vmatpush2.msra.mxu0 %v668
        %733 = vmatprep.subr.mxu0 0.0
        %734 = vmatpush2.msra.mxu0 %v667
        %735 = vmatprep.subr.mxu0 0.0
        %736 = vmatpush2.msra.mxu0 %v666
        %737 = vmatprep.subr.mxu0 0.0
        %738 = vmatpush2.msra.mxu0 %v665
        %739 = vmatprep.subr.mxu0 0.0
        %740 = vmatpush2.msra.mxu0 %v664
        %741 = vmatprep.subr.mxu0 0.0
        %742 = vmatpush2.msra.mxu0 %v663
        %743 = vmatprep.mubr.f32.mxu0 %v645
        %744 = vmatmul.mubr.f32.gmra.mxu0 %v643
        %v745 = vpop.f32.mrf.mxu0
        %v746 = vadd.f32 0.0, %v745
        %v747 = vpop.f32.mrf.mxu0
        %748 = vdwg.mxu0
        %vm749 = vcmask 519168
        %v750 = vsel %vm749, %v746, 0.0
        %751 = vadd.xlane.f32.xlu0 %v750
        %v752 = vpop.xlane.xlu0 %751
        %vm753 = vcmask 3072
        %754 = vst.msk [vmem:[%s260] sm:$0xf] %vm753, %v752
        %v755 = vmul.f32 %v746, %v746
        %v756 = vsel %vm749, %v755, 0.0
        %757 = vadd.xlane.f32.xlu0 %v756
        %v758 = vpop.xlane.xlu0 %757
        %vm759 = vcmask 11272
        %760 = vst.msk [vmem:[%s260] sm:$0xf] %vm759, %v758
        %761 = vst.msk [vmem:[%s245] sm:$0xf] %vm749, %v746
        %s762 = sand.u32 %s139, 1
        %s763 = scalar_lea.sflag [#allocation3], %s762
        %s764 = sand.u32 %s139, 1
        %s765 = smul.addr %s764, 4
        %s766 = scalar_lea.vmem [#allocation2], %s765
        %p767 = scmp.lt.s32.totalorder %s21, 1
        %s768 = scalar_select %p767, %s21, 1
        %s769 = smul.addr %s768, 4
        %s770 = scalar_lea.vmem %s6, %s769
        // Predicated region
        $region41: #{tpu_custom_call.1} parent=39 // pred_check
          %p771 = pneg %p149
        $region42: #{tpu_custom_call.1} parent=39 // pred_check_branch
          %773 = sbr.rel (%p771) target = $region44
        $region43: #{tpu_custom_call.1} parent=39 // pred_region
          %s775 = ssub.s32 64, 64
          %776 = vsyncadd %s763, %s775
          %s777 = smul.addr %s21, 64
          %s778 = scalar_lea.hbm %s5, %s777
          %s780 = sshll.u32 %s766, 4
          %s781 = int_to_ptr.vmem [resolvable:$true] %s780
          %783 = dma.vmem_to_hbm [thread:$0]  %s781, 64, %s778, %s763
        $region44: #{tpu_custom_call.1} parent=39 // pred_fallthru
          _
        // Predicated region
        $region45: #{tpu_custom_call.1} parent=39 // pred_check
          %p784 = pneg %p175
        $region46: #{tpu_custom_call.1} parent=39 // pred_check_branch
          %786 = sbr.rel (%p784) target = $region48
        $region47: #{tpu_custom_call.1} parent=39 // pred_region
          _
        $region48: #{tpu_custom_call.1} parent=39 // pred_fallthru
          _
      $region40: #{tpu_custom_call.1} parent=5 // pred_fallthru
        _
      %p787 = scmp.le.s32.totalorder 2, %s16
      // Predicated region
      $region49: #{tpu_custom_call.1} parent=5 // pred_check
        %p788 = pneg %p787
      $region50: #{tpu_custom_call.1} parent=5 // pred_check_branch
        %790 = sbr.rel (%p788) target = $region52
      $region51: #{tpu_custom_call.1} parent=5 // pred_region
        %s791 = ssub.s32 %s16, 2
        // Predicated region
        $region53: #{tpu_custom_call.1} parent=51 // pred_check
          %p792 = pneg %p155
        $region54: #{tpu_custom_call.1} parent=51 // pred_check_branch
          %794 = sbr.rel (%p792) target = $region56
        $region55: #{tpu_custom_call.1} parent=51 // pred_region
          %s795 = sand.u32 %s140, 1
          %s796 = scalar_lea.sflag [#allocation3], %s795
          %s797 = sand.u32 %s140, 1
          %s798 = smul.addr %s797, 4
          %s799 = scalar_lea.vmem [#allocation2], %s798
          %800 = dma.done %s796, 64
        $region56: #{tpu_custom_call.1} parent=51 // pred_fallthru
          _
        // Predicated region
        $region57: #{tpu_custom_call.1} parent=51 // pred_check
          %p801 = pneg %p181
        $region58: #{tpu_custom_call.1} parent=51 // pred_check_branch
          %803 = sbr.rel (%p801) target = $region60
        $region59: #{tpu_custom_call.1} parent=51 // pred_region
          %p804 = scmp.lt.s32.totalorder %s22, 1
          %s805 = scalar_select %p804, %s22, 1
          %s806 = smul.addr %s805, 4
          %s807 = scalar_lea.vmem %s6, %s806
        $region60: #{tpu_custom_call.1} parent=51 // pred_fallthru
          _
      $region52: #{tpu_custom_call.1} parent=5 // pred_fallthru
        _
    $region6: #{tpu_custom_call.1} parent=1 // loop_footer
      %s20 = sadd.s32 1, %s16
    $region7: #{tpu_custom_call.1} parent=1 // loop_footer_branch
      %15 = sbr.rel target = $region3
    $region8: #{tpu_custom_call.1} parent=1 // loop_exit
      _
    %808 = vsyncpa [#allocation3], 1
    %s809 = scalar_lea.sflag [#allocation3], 1
    %810 = vsyncpa %s809, 1

</llo_original>
